<compile_context>
chip_gen: v7x
topology: tpu7x:2x2x1
jax: 0.10.0
libtpu: 0.0.40
codegen_flags: <defaults>
</compile_context>

<pallas_src>
import jax
import jax.numpy as jnp
from jax.experimental import pallas as pl
from jax.experimental.pallas import tpu as pltpu

N_STATES = 64
N_ACTIONS = 64
HIDDEN = 640


def _round_up(n, m):
    return ((n + m - 1) // m) * m


def net_kernel(x_ref, w1_ref, b1_ref, w2_ref, b2_ref, o_ref):
    # fc1: x @ W1^T + b1, ReLU.  x cast to bf16 on the VPU (no-op if already bf16).
    x = x_ref[...].astype(jnp.bfloat16)
    h = jnp.dot(x, w1_ref[...], preferred_element_type=jnp.float32)
    h = jnp.maximum(h + b1_ref[...], 0.0)                 # (TB, 640) + (1, 640)
    # out: h @ W2^T + b2   -> (TB, 64) f32
    a = jnp.dot(h.astype(jnp.bfloat16), w2_ref[...],
                preferred_element_type=jnp.float32)
    o_ref[...] = (a + b2_ref[...]).astype(o_ref.dtype)


def prepare_params(w1, b1, w2, b2):
    """One-time parameter preparation (do NOT call per forward pass).

    w1: (HIDDEN, N_STATES) f32, b1: (HIDDEN,), w2: (N_ACTIONS, HIDDEN), b2: (N_ACTIONS,)
    Returns kernel-layout params:
      w1_t: (N_STATES, HIDDEN)  bf16
      b1:   (1, HIDDEN)         f32
      w2_t: (HIDDEN, N_ACTIONS) bf16
      b2:   (1, N_ACTIONS)      f32
    """
    w1_t = w1.T.astype(jnp.bfloat16)                        # (64, 640)
    b1_2d = b1.reshape(1, HIDDEN).astype(jnp.float32)       # (1, 640)
    w2_t = w2.T.astype(jnp.bfloat16)                        # (640, 64)
    b2_2d = b2.reshape(1, N_ACTIONS).astype(jnp.float32)    # (1, 64)
    return {"w1_t": w1_t, "b1": b1_2d, "w2_t": w2_t, "b2": b2_2d}


def net_forward(x, params, tb=1024):
    """x: (B, N_STATES) f32 or bf16; params from prepare_params.

    Returns (B, N_ACTIONS) f32. When B is already a multiple of the chosen batch
    tile no post-kernel slice/copy is emitted at all.
    """
    B = x.shape[0]

    # --- Tile selection: derive TB from the block count (minimizes padding). ---
    n_blocks = pl.cdiv(B, tb)
    if B >= 16:
        # Guarantee >= 2 grid steps so "parallel" engages both TCs on v7x.
        # Weights are tiny, so duplicating them into both cores' VMEM is free;
        # on single-TC v5e/v6e this costs at most one extra ~0.35us grid step.
        n_blocks = max(n_blocks, 2)
    TB = _round_up(pl.cdiv(B, n_blocks), 8)
    B_pad = TB * n_blocks
    if B_pad != B:
        x = jnp.pad(x, ((0, B_pad - B), (0, 0)))

    cost = pl.CostEstimate(
        flops=2 * B_pad * (N_STATES * HIDDEN + HIDDEN * N_ACTIONS),
        transcendentals=0,
        bytes_accessed=(x.size * x.dtype.itemsize
                        + params["w1_t"].size * 2 + params["w2_t"].size * 2
                        + params["b1"].size * 4 + params["b2"].size * 4
                        + B_pad * N_ACTIONS * 4),
    )

    out = pl.pallas_call(
        net_kernel,
        out_shape=jax.ShapeDtypeStruct((B_pad, N_ACTIONS), jnp.float32),
        grid_spec=pltpu.PrefetchScalarGridSpec(
            num_scalar_prefetch=0,
            grid=(n_blocks,),
            in_specs=[
                pl.BlockSpec((TB, N_STATES), lambda i: (i, 0)),       # x: tiled on batch
                pl.BlockSpec((N_STATES, HIDDEN), lambda i: (0, 0)),   # w1_t: VMEM-resident
                pl.BlockSpec((1, HIDDEN), lambda i: (0, 0)),          # b1
                pl.BlockSpec((HIDDEN, N_ACTIONS), lambda i: (0, 0)),  # w2_t: VMEM-resident
                pl.BlockSpec((1, N_ACTIONS), lambda i: (0, 0)),       # b2
            ],
            out_specs=pl.BlockSpec((TB, N_ACTIONS), lambda i: (i, 0)),
        ),
        compiler_params=pltpu.CompilerParams(
            dimension_semantics=("parallel",)),                       # megacore on v7x
        cost_estimate=cost,
    )(x, params["w1_t"], params["b1"], params["w2_t"], params["b2"])

    # Only slice the batch dim if padding was actually applied (avoids an extra
    # XLA copy pass in the aligned common case).
    return out if B_pad == B else out[:B]


def init_params(key):
    k1, k2, k3, k4 = jax.random.split(key, 4)
    # Match module __init__: weight ~ Normal(0, 0.1); biases PyTorch-default uniform.
    w1 = 0.1 * jax.random.normal(k1, (HIDDEN, N_STATES), dtype=jnp.float32)
    b1 = jax.random.uniform(k2, (HIDDEN,), dtype=jnp.float32,
                            minval=-1.0 / jnp.sqrt(N_STATES),
                            maxval=1.0 / jnp.sqrt(N_STATES))
    w2 = 0.1 * jax.random.normal(k3, (N_ACTIONS, HIDDEN), dtype=jnp.float32)
    b2 = jax.random.uniform(k4, (N_ACTIONS,), dtype=jnp.float32,
                            minval=-1.0 / jnp.sqrt(HIDDEN),
                            maxval=1.0 / jnp.sqrt(HIDDEN))
    return w1, b1, w2, b2


def _reference(x, w1, b1, w2, b2):
    """Reference mirroring the kernel's bf16 weight/activation storage, f32 accumulation."""
    xb = x.astype(jnp.bfloat16).astype(jnp.float32)
    w1b = w1.astype(jnp.bfloat16).astype(jnp.float32)
    w2b = w2.astype(jnp.bfloat16).astype(jnp.float32)
    h = jnp.maximum(xb @ w1b.T + b1, 0.0)
    return h.astype(jnp.bfloat16).astype(jnp.float32) @ w2b.T + b2


if __name__ == "__main__":
    key = jax.random.PRNGKey(0)
    kx, kx2, kp = jax.random.split(key, 3)
    w1, b1, w2, b2 = init_params(kp)
    params = prepare_params(w1, b1, w2, b2)      # one-time (outside the hot path)

    # Case 1: small aligned batch (no padding, no post-kernel slice).
    B = 8
    x = jax.random.normal(kx, (B, N_STATES), dtype=jnp.float32)
    out = net_forward(x, params)
    jax.block_until_ready(out)
    assert out.shape == (B, N_ACTIONS)
    ref = _reference(x, w1, b1, w2, b2)
    assert jnp.allclose(out, ref, atol=2e-2, rtol=2e-2)
    ref_f32 = jnp.maximum(x @ w1.T + b1, 0.0) @ w2.T + b2
    assert jnp.max(jnp.abs(out - ref_f32)) < 0.2       # loose: bf16 weights

    # Case 2: batch needing padding + multi-block grid (exercises TB selection path).
    B2 = 20
    x2 = jax.random.normal(kx2, (B2, N_STATES), dtype=jnp.float32)
    out2 = net_forward(x2, params)
    jax.block_until_ready(out2)
    assert out2.shape == (B2, N_ACTIONS)
    ref2 = _reference(x2, w1, b1, w2, b2)
    assert jnp.allclose(out2, ref2, atol=2e-2, rtol=2e-2)

    print("KERNEL_OK")
</pallas_src>

<mosaic_0001>
module attributes {stable_mosaic.version = 11 : i64} {
  func.func @net_kernel(%arg0: i32, %arg1: memref<8x64xf32, #tpu.memory_space<vmem>>, %arg2: memref<64x640xbf16, #tpu.memory_space<vmem>>, %arg3: memref<1x640xf32, #tpu.memory_space<vmem>>, %arg4: memref<640x64xbf16, #tpu.memory_space<vmem>>, %arg5: memref<1x64xf32, #tpu.memory_space<vmem>>, %arg6: memref<8x64xf32, #tpu.memory_space<vmem>>) attributes {dimension_semantics = [#tpu.dimension_semantics<parallel>], iteration_bounds = array<i64: 1>, scalar_prefetch = 0 : i64, scratch_operands = 0 : i64, tpu.core_type = #tpu.core_type<tc>, window_params = [{transform_indices = @transform_0, window_bounds = array<i64: 8, 64>}, {pipeline_mode = #tpu.pipeline_mode<synchronous>, transform_indices = @transform_1, window_bounds = array<i64: 64, 640>}, {pipeline_mode = #tpu.pipeline_mode<synchronous>, transform_indices = @transform_2, window_bounds = array<i64: 1, 640>}, {pipeline_mode = #tpu.pipeline_mode<synchronous>, transform_indices = @transform_3, window_bounds = array<i64: 640, 64>}, {pipeline_mode = #tpu.pipeline_mode<synchronous>, transform_indices = @transform_4, window_bounds = array<i64: 1, 64>}, {transform_indices = @transform_5, window_bounds = array<i64: 8, 64>}]} {
    %c0 = arith.constant 0 : index
    %c0_0 = arith.constant 0 : index
    %0 = vector.load %arg1[%c0, %c0_0] : memref<8x64xf32, #tpu.memory_space<vmem>>, vector<8x64xf32>
    %1 = arith.truncf %0 : vector<8x64xf32> to vector<8x64xbf16>
    %c0_1 = arith.constant 0 : index
    %c0_2 = arith.constant 0 : index
    %2 = vector.load %arg2[%c0_1, %c0_2] : memref<64x640xbf16, #tpu.memory_space<vmem>>, vector<64x640xbf16>
    %cst = arith.constant dense<0.000000e+00> : vector<8x640xf32>
    %3 = tpu.matmul %1, %2, %cst {dimension_numbers = #tpu.dot_dimension_numbers<[1], [0], [0], [1], [0, 0, 1, 1], [], []>} : vector<8x64xbf16>, vector<64x640xbf16>, vector<8x640xf32> -> vector<8x640xf32>
    %c0_3 = arith.constant 0 : index
    %c0_4 = arith.constant 0 : index
    %4 = vector.load %arg3[%c0_3, %c0_4] : memref<1x640xf32, #tpu.memory_space<vmem>>, vector<1x640xf32>
    %5 = vector.broadcast %4 : vector<1x640xf32> to vector<8x640xf32>
    %6 = arith.addf %3, %5 : vector<8x640xf32>
    %cst_5 = arith.constant 0.000000e+00 : f32
    %7 = vector.broadcast %cst_5 : f32 to vector<8x640xf32>
    %8 = arith.maximumf %6, %7 : vector<8x640xf32>
    %9 = arith.truncf %8 : vector<8x640xf32> to vector<8x640xbf16>
    %c0_6 = arith.constant 0 : index
    %c0_7 = arith.constant 0 : index
    %10 = vector.load %arg4[%c0_6, %c0_7] : memref<640x64xbf16, #tpu.memory_space<vmem>>, vector<640x64xbf16>
    %cst_8 = arith.constant dense<0.000000e+00> : vector<8x64xf32>
    %11 = tpu.matmul %9, %10, %cst_8 {dimension_numbers = #tpu.dot_dimension_numbers<[1], [0], [0], [1], [0, 0, 1, 1], [], []>} : vector<8x640xbf16>, vector<640x64xbf16>, vector<8x64xf32> -> vector<8x64xf32>
    %c0_9 = arith.constant 0 : index
    %c0_10 = arith.constant 0 : index
    %12 = vector.load %arg5[%c0_9, %c0_10] : memref<1x64xf32, #tpu.memory_space<vmem>>, vector<1x64xf32>
    %13 = vector.broadcast %12 : vector<1x64xf32> to vector<8x64xf32>
    %14 = arith.addf %11, %13 : vector<8x64xf32>
    %c0_11 = arith.constant 0 : index
    %c0_12 = arith.constant 0 : index
    %15 = vector.load %arg6[%c0_11, %c0_12] : memref<8x64xf32, #tpu.memory_space<vmem>>, vector<8x64xf32>
    tpu.vector_store %arg6[%c0_11, %c0_12], %14 {strides = array<i32>} : memref<8x64xf32, #tpu.memory_space<vmem>>, vector<8x64xf32>,
    return
  }
  func.func @transform_0(%arg0: i32) -> (i32, i32) {
    %c0_i32 = arith.constant 0 : i32
    %c0_i32_0 = arith.constant 0 : i32
    return %arg0, %c0_i32 : i32, i32
  }
  func.func @transform_1(%arg0: i32) -> (i32, i32) {
    %c0_i32 = arith.constant 0 : i32
    %c0_i32_0 = arith.constant 0 : i32
    %c0_i32_1 = arith.constant 0 : i32
    return %c0_i32, %c0_i32_0 : i32, i32
  }
  func.func @transform_2(%arg0: i32) -> (i32, i32) {
    %c0_i32 = arith.constant 0 : i32
    %c0_i32_0 = arith.constant 0 : i32
    %c0_i32_1 = arith.constant 0 : i32
    return %c0_i32, %c0_i32_0 : i32, i32
  }
  func.func @transform_3(%arg0: i32) -> (i32, i32) {
    %c0_i32 = arith.constant 0 : i32
    %c0_i32_0 = arith.constant 0 : i32
    %c0_i32_1 = arith.constant 0 : i32
    return %c0_i32, %c0_i32_0 : i32, i32
  }
  func.func @transform_4(%arg0: i32) -> (i32, i32) {
    %c0_i32 = arith.constant 0 : i32
    %c0_i32_0 = arith.constant 0 : i32
    %c0_i32_1 = arith.constant 0 : i32
    return %c0_i32, %c0_i32_0 : i32, i32
  }
  func.func @transform_5(%arg0: i32) -> (i32, i32) {
    %c0_i32 = arith.constant 0 : i32
    %c0_i32_0 = arith.constant 0 : i32
    return %arg0, %c0_i32 : i32, i32
  }
}

</mosaic_0001>

<llo_original>
// kernel: tpu_custom_call.1
$region0: #{tpu_custom_call.1}
  #allocation0 [shape = 'u32[]', space=smem, size = 0x4, offset = 0x4, fixed_abs, tag = 'smem constant byte address 0x4 - core index']
  #allocation1 [shape = 'u32[144,128]{1,0:T(1,128)}', space=vmem, size = 0x12000, scoped, tag = 'internal scratch']
  %s0 = inlined_call_operand.vmem [shape: f32[8,64], index: 0, kind: input, shape index: {}]
  %s1 = inlined_call_operand.vmem [shape: bf16[64,640], index: 1, kind: input, shape index: {}]
  %s2 = inlined_call_operand.vmem [shape: f32[1,640], index: 2, kind: input, shape index: {}]
  %s3 = inlined_call_operand.vmem [shape: bf16[640,64], index: 3, kind: input, shape index: {}]
  %s4 = inlined_call_operand.vmem [shape: f32[1,64], index: 4, kind: input, shape index: {}]
  %s5 = inlined_call_operand.hbm [shape: f32[8,64], index: 5, kind: output, shape index: {}]
  %s6 = sld [smem:[#allocation0]]
  $region30: #{tpu_custom_call.1} parent=0
    _
  %s8 = ssub.s32 1, %s6
  %s9 = scalar_select 0, %s8, %s6
  $region1: #{tpu_custom_call.1} parent=0
    #allocation2 [shape = 'u8[4096]{0}', space=vmem, size = 0x1000, scoped, tag = 'output window, operand 0, single buffered']
    #allocation3 [shape = 's32[1]{0}', space=sflag, size = 0x4, scoped, tag = 'scoped memory for tpu_custom_call.1']
    %10 = vsyncpa [#allocation3], 0
    // Predicated region
    $region2: #{tpu_custom_call.1} parent=1 // pred_check
      _
    $region3: #{tpu_custom_call.1} parent=1 // pred_check_branch
      %12 = sbr.rel (0) target = $region5
    $region4: #{tpu_custom_call.1} parent=1 // pred_region
      _
    $region5: #{tpu_custom_call.1} parent=1 // pred_fallthru
      _
    // Predicated region
    $region6: #{tpu_custom_call.1} parent=1 // pred_check
      _
    $region7: #{tpu_custom_call.1} parent=1 // pred_check_branch
      %14 = sbr.rel (0) target = $region9
    $region8: #{tpu_custom_call.1} parent=1 // pred_region
      _
    $region9: #{tpu_custom_call.1} parent=1 // pred_fallthru
      _
    // Predicated region
    $region10: #{tpu_custom_call.1} parent=1 // pred_check
      _
    $region11: #{tpu_custom_call.1} parent=1 // pred_check_branch
      %16 = sbr.rel (0) target = $region13
    $region12: #{tpu_custom_call.1} parent=1 // pred_region
      _
    $region13: #{tpu_custom_call.1} parent=1 // pred_fallthru
      _
    // Predicated region
    $region14: #{tpu_custom_call.1} parent=1 // pred_check
      _
    $region15: #{tpu_custom_call.1} parent=1 // pred_check_branch
      %18 = sbr.rel (0) target = $region17
    $region16: #{tpu_custom_call.1} parent=1 // pred_region
      _
    $region17: #{tpu_custom_call.1} parent=1 // pred_fallthru
      _
    // Predicated region
    $region18: #{tpu_custom_call.1} parent=1 // pred_check
      _
    $region19: #{tpu_custom_call.1} parent=1 // pred_check_branch
      %20 = sbr.rel (0) target = $region21
    $region20: #{tpu_custom_call.1} parent=1 // pred_region
      _
    $region21: #{tpu_custom_call.1} parent=1 // pred_fallthru
      _
    %v22 = vld [vmem:[%s0] sm:$0xff]
    %v23 = vpack.c.bf16 %v22, %v22
    %v24 = vld [vmem:[%s1] sm:$0xff]
    %v25 = vld [vmem:[%s1 + $0x8] sm:$0xff]
    %v26 = vld [vmem:[%s1 + $0x10] sm:$0xf]
    %v27 = vld [vmem:[%s1 + $0x14] sm:$0xff]
    %v28 = vld [vmem:[%s1 + $0x1c] sm:$0xff]
    %v29 = vld [vmem:[%s1 + $0x24] sm:$0xf]
    %v30 = vld [vmem:[%s1 + $0x28] sm:$0xff]
    %v31 = vld [vmem:[%s1 + $0x30] sm:$0xff]
    %v32 = vld [vmem:[%s1 + $0x38] sm:$0xf]
    %v33 = vld [vmem:[%s1 + $0x3c] sm:$0xff]
    %v34 = vld [vmem:[%s1 + $0x44] sm:$0xff]
    %v35 = vld [vmem:[%s1 + $0x4c] sm:$0xf]
    %v36 = vld [vmem:[%s1 + $0x50] sm:$0xff]
    %v37 = vld [vmem:[%s1 + $0x58] sm:$0xff]
    %v38 = vld [vmem:[%s1 + $0x60] sm:$0xf]
    %v39 = vld [vmem:[%s1 + $0x64] sm:$0xff]
    %v40 = vld [vmem:[%s1 + $0x6c] sm:$0xff]
    %v41 = vld [vmem:[%s1 + $0x74] sm:$0xf]
    %v42 = vld [vmem:[%s1 + $0x78] sm:$0xff]
    %v43 = vld [vmem:[%s1 + $0x80] sm:$0xff]
    %v44 = vld [vmem:[%s1 + $0x88] sm:$0xf]
    %v45 = vld [vmem:[%s1 + $0x8c] sm:$0xff]
    %v46 = vld [vmem:[%s1 + $0x94] sm:$0xff]
    %v47 = vld [vmem:[%s1 + $0x9c] sm:$0xf]
    %v48 = vld [vmem:[%s2] sm:$0x1f]
    %v50 = vlaneseq
    %v51 = vshrl.u32 %v50, 7
    %v52 = vsub.s32 0, %v51
    %v53 = vrot.slane %v48, %v52
    %v54 = vlaneseq
    %v55 = vshrl.u32 %v54, 7
    %v56 = vsub.s32 1, %v55
    %v57 = vrot.slane %v48, %v56
    %v58 = vlaneseq
    %v59 = vshrl.u32 %v58, 7
    %v60 = vsub.s32 2, %v59
    %v61 = vrot.slane %v48, %v60
    %v62 = vlaneseq
    %v63 = vshrl.u32 %v62, 7
    %v64 = vsub.s32 3, %v63
    %v65 = vrot.slane %v48, %v64
    %v66 = vlaneseq
    %v67 = vshrl.u32 %v66, 7
    %v68 = vsub.s32 4, %v67
    %v69 = vrot.slane %v48, %v68
    %v99 = vunpack.c.l.b16 %v24
    %v100 = vunpack.c.h.b16 %v24
    %v101 = vunpack.c.l.b16 %v25
    %v102 = vunpack.c.h.b16 %v25
    %v103 = vunpack.c.l.b16 %v26
    %v104 = vunpack.c.l.b16 %v27
    %v105 = vunpack.c.h.b16 %v27
    %v106 = vunpack.c.l.b16 %v28
    %v107 = vunpack.c.h.b16 %v28
    %v108 = vunpack.c.l.b16 %v29
    %v109 = vunpack.c.l.b16 %v30
    %v110 = vunpack.c.h.b16 %v30
    %v111 = vunpack.c.l.b16 %v31
    %v112 = vunpack.c.h.b16 %v31
    %v113 = vunpack.c.l.b16 %v32
    %v114 = vunpack.c.l.b16 %v33
    %v115 = vunpack.c.h.b16 %v33
    %v116 = vunpack.c.l.b16 %v34
    %v117 = vunpack.c.h.b16 %v34
    %v118 = vunpack.c.l.b16 %v35
    %v119 = vunpack.c.l.b16 %v36
    %v120 = vunpack.c.h.b16 %v36
    %v121 = vunpack.c.l.b16 %v37
    %v122 = vunpack.c.h.b16 %v37
    %v123 = vunpack.c.l.b16 %v38
    %v124 = vunpack.c.l.b16 %v39
    %v125 = vunpack.c.h.b16 %v39
    %v126 = vunpack.c.l.b16 %v40
    %v127 = vunpack.c.h.b16 %v40
    %v128 = vunpack.c.l.b16 %v41
    %v129 = vunpack.c.l.b16 %v42
    %v130 = vunpack.c.h.b16 %v42
    %v131 = vunpack.c.l.b16 %v43
    %v132 = vunpack.c.h.b16 %v43
    %v133 = vunpack.c.l.b16 %v44
    %v134 = vunpack.c.l.b16 %v45
    %v135 = vunpack.c.h.b16 %v45
    %v136 = vunpack.c.l.b16 %v46
    %v137 = vunpack.c.h.b16 %v46
    %v138 = vunpack.c.l.b16 %v47
    %v139 = vpack.c.b16 %v104, %v99
    %v140 = vpack.c.b16 %v105, %v100
    %v141 = vpack.c.b16 %v106, %v101
    %v142 = vpack.c.b16 %v107, %v102
    %v143 = vpack.c.b16 %v108, %v103
    %v144 = vpack.c.b16 %v114, %v109
    %v145 = vpack.c.b16 %v115, %v110
    %v146 = vpack.c.b16 %v116, %v111
    %v147 = vpack.c.b16 %v117, %v112
    %v148 = vpack.c.b16 %v118, %v113
    %v149 = vpack.c.b16 %v124, %v119
    %v150 = vpack.c.b16 %v125, %v120
    %v151 = vpack.c.b16 %v126, %v121
    %v152 = vpack.c.b16 %v127, %v122
    %v153 = vpack.c.b16 %v128, %v123
    %v154 = vpack.c.b16 %v134, %v129
    %v155 = vpack.c.b16 %v135, %v130
    %v156 = vpack.c.b16 %v136, %v131
    %v157 = vpack.c.b16 %v137, %v132
    %v158 = vpack.c.b16 %v138, %v133
    %vm179 = vcmask 523264
    %v181 = vsel %vm179, %v23, 0
    %183 = vmatprep.subr.bf16.mxu0 %v140
    %184 = vmatpush1.bf16.msra.mxu0 %v139
    %185 = vmatprep.subr.bf16.mxu0 %v145
    %186 = vmatpush1.bf16.msra.mxu0 %v144
    %187 = vmatprep.subr.bf16.mxu0 %v150
    %188 = vmatpush1.bf16.msra.mxu0 %v149
    %189 = vmatprep.subr.bf16.mxu0 %v155
    %190 = vmatpush1.bf16.msra.mxu0 %v154
    %191 = vmatprep.subr.bf16.mxu0 0
    %192 = vmatpush1.bf16.msra.mxu0 0
    %193 = vmatprep.subr.bf16.mxu0 0
    %194 = vmatpush1.bf16.msra.mxu0 0
    %195 = vmatprep.subr.bf16.mxu0 0
    %196 = vmatpush1.bf16.msra.mxu0 0
    %197 = vmatprep.subr.bf16.mxu0 0
    %198 = vmatpush1.bf16.msra.mxu0 0
    %199 = vmatprep.subr.bf16.mxu0 0
    %200 = vmatpush1.bf16.msra.mxu0 0
    %201 = vmatprep.subr.bf16.mxu0 0
    %202 = vmatpush1.bf16.msra.mxu0 0
    %203 = vmatprep.subr.bf16.mxu0 0
    %204 = vmatpush1.bf16.msra.mxu0 0
    %205 = vmatprep.subr.bf16.mxu0 0
    %206 = vmatpush1.bf16.msra.mxu0 0
    %207 = vmatprep.subr.bf16.mxu0 0
    %208 = vmatpush1.bf16.msra.mxu0 0
    %209 = vmatprep.subr.bf16.mxu0 0
    %210 = vmatpush1.bf16.msra.mxu0 0
    %211 = vmatprep.subr.bf16.mxu0 0
    %212 = vmatpush1.bf16.msra.mxu0 0
    %213 = vmatprep.subr.bf16.mxu0 0
    %214 = vmatpush1.bf16.msra.mxu0 0
    %215 = vmatprep.mubr.bf16.mxu0 0
    %216 = vmatmul.mubr.bf16.gmra.mrb[0].mxu0 %v181
    %v217 = vpop.f32.mrb[0].mxu0
    %v218 = vadd.f32 %v53, %v217
    %v219 = vpop.f32.mrb[0].mxu0
    %v220 = vadd.f32 %v57, %v219
    %v221 = vpop.f32.mrb[0].mxu0
    %v222 = vpop.f32.mrb[0].mxu0
    %223 = vdwg.mxu0
    %224 = vmatprep.subr.bf16.mxu0 %v142
    %225 = vmatpush1.bf16.msra.mxu0 %v141
    %226 = vmatprep.subr.bf16.mxu0 %v147
    %227 = vmatpush1.bf16.msra.mxu0 %v146
    %228 = vmatprep.subr.bf16.mxu0 %v152
    %229 = vmatpush1.bf16.msra.mxu0 %v151
    %230 = vmatprep.subr.bf16.mxu0 %v157
    %231 = vmatpush1.bf16.msra.mxu0 %v156
    %232 = vmatprep.subr.bf16.mxu0 0
    %233 = vmatpush1.bf16.msra.mxu0 0
    %234 = vmatprep.subr.bf16.mxu0 0
    %235 = vmatpush1.bf16.msra.mxu0 0
    %236 = vmatprep.subr.bf16.mxu0 0
    %237 = vmatpush1.bf16.msra.mxu0 0
    %238 = vmatprep.subr.bf16.mxu0 0
    %239 = vmatpush1.bf16.msra.mxu0 0
    %240 = vmatprep.subr.bf16.mxu0 0
    %241 = vmatpush1.bf16.msra.mxu0 0
    %242 = vmatprep.subr.bf16.mxu0 0
    %243 = vmatpush1.bf16.msra.mxu0 0
    %244 = vmatprep.subr.bf16.mxu0 0
    %245 = vmatpush1.bf16.msra.mxu0 0
    %246 = vmatprep.subr.bf16.mxu0 0
    %247 = vmatpush1.bf16.msra.mxu0 0
    %248 = vmatprep.subr.bf16.mxu0 0
    %249 = vmatpush1.bf16.msra.mxu0 0
    %250 = vmatprep.subr.bf16.mxu0 0
    %251 = vmatpush1.bf16.msra.mxu0 0
    %252 = vmatprep.subr.bf16.mxu0 0
    %253 = vmatpush1.bf16.msra.mxu0 0
    %254 = vmatprep.subr.bf16.mxu0 0
    %255 = vmatpush1.bf16.msra.mxu0 0
    %256 = vmatprep.mubr.bf16.mxu0 0
    %257 = vmatmul.mubr.bf16.gmra.mrb[0].mxu0 %v181
    %v258 = vpop.f32.mrb[0].mxu0
    %v259 = vadd.f32 %v61, %v258
    %v260 = vpop.f32.mrb[0].mxu0
    %v261 = vadd.f32 %v65, %v260
    %v262 = vpop.f32.mrb[0].mxu0
    %v263 = vpop.f32.mrb[0].mxu0
    %264 = vdwg.mxu0
    %265 = vmatprep.subr.bf16.mxu0 0
    %266 = vmatpush1.bf16.msra.mxu0 %v143
    %267 = vmatprep.subr.bf16.mxu0 0
    %268 = vmatpush1.bf16.msra.mxu0 %v148
    %269 = vmatprep.subr.bf16.mxu0 0
    %270 = vmatpush1.bf16.msra.mxu0 %v153
    %271 = vmatprep.subr.bf16.mxu0 0
    %272 = vmatpush1.bf16.msra.mxu0 %v158
    %273 = vmatprep.subr.bf16.mxu0 0
    %274 = vmatpush1.bf16.msra.mxu0 0
    %275 = vmatprep.subr.bf16.mxu0 0
    %276 = vmatpush1.bf16.msra.mxu0 0
    %277 = vmatprep.subr.bf16.mxu0 0
    %278 = vmatpush1.bf16.msra.mxu0 0
    %279 = vmatprep.subr.bf16.mxu0 0
    %280 = vmatpush1.bf16.msra.mxu0 0
    %281 = vmatprep.subr.bf16.mxu0 0
    %282 = vmatpush1.bf16.msra.mxu0 0
    %283 = vmatprep.subr.bf16.mxu0 0
    %284 = vmatpush1.bf16.msra.mxu0 0
    %285 = vmatprep.subr.bf16.mxu0 0
    %286 = vmatpush1.bf16.msra.mxu0 0
    %287 = vmatprep.subr.bf16.mxu0 0
    %288 = vmatpush1.bf16.msra.mxu0 0
    %289 = vmatprep.subr.bf16.mxu0 0
    %290 = vmatpush1.bf16.msra.mxu0 0
    %291 = vmatprep.subr.bf16.mxu0 0
    %292 = vmatpush1.bf16.msra.mxu0 0
    %293 = vmatprep.subr.bf16.mxu0 0
    %294 = vmatpush1.bf16.msra.mxu0 0
    %295 = vmatprep.subr.bf16.mxu0 0
    %296 = vmatpush1.bf16.msra.mxu0 0
    %297 = vmatprep.mubr.bf16.mxu0 0
    %298 = vmatmul.mubr.bf16.gmra.mrb[0].mxu0 %v181
    %v299 = vpop.f32.mrb[0].mxu0
    %v300 = vadd.f32 %v69, %v299
    %v301 = vpop.f32.mrb[0].mxu0
    %v302 = vpop.f32.mrb[0].mxu0
    %v303 = vpop.f32.mrb[0].mxu0
    %304 = vdwg.mxu0
    %v305 = vmax.f32 %v218, 0.0
    %v306 = vmax.f32 %v220, 0.0
    %v307 = vmax.f32 %v259, 0.0
    %v308 = vmax.f32 %v261, 0.0
    %v309 = vmax.f32 %v300, 0.0
    %v310 = vpack.c.bf16 %v305, %v305
    %v311 = vpack.c.bf16 %v306, %v306
    %v312 = vpack.c.bf16 %v307, %v307
    %v313 = vpack.c.bf16 %v308, %v308
    %v314 = vpack.c.bf16 %v309, %v309
    %v315 = vld [vmem:[%s3] sm:$0xf]
    %v316 = vld [vmem:[%s3 + $0x4] sm:$0xf]
    %v317 = vld [vmem:[%s3 + $0x8] sm:$0xf]
    %v318 = vld [vmem:[%s3 + $0xc] sm:$0xf]
    %v319 = vld [vmem:[%s3 + $0x10] sm:$0xf]
    %v320 = vld [vmem:[%s3 + $0x14] sm:$0xf]
    %v321 = vld [vmem:[%s3 + $0x18] sm:$0xf]
    %v322 = vld [vmem:[%s3 + $0x1c] sm:$0xf]
    %v323 = vld [vmem:[%s3 + $0x20] sm:$0xf]
    %v324 = vld [vmem:[%s3 + $0x24] sm:$0xf]
    %v325 = vld [vmem:[%s3 + $0x28] sm:$0xf]
    %v326 = vld [vmem:[%s3 + $0x2c] sm:$0xf]
    %v327 = vld [vmem:[%s3 + $0x30] sm:$0xf]
    %v328 = vld [vmem:[%s3 + $0x34] sm:$0xf]
    %v329 = vld [vmem:[%s3 + $0x38] sm:$0xf]
    %v330 = vld [vmem:[%s3 + $0x3c] sm:$0xf]
    %v331 = vld [vmem:[%s3 + $0x40] sm:$0xf]
    %v332 = vld [vmem:[%s3 + $0x44] sm:$0xf]
    %v333 = vld [vmem:[%s3 + $0x48] sm:$0xf]
    %v334 = vld [vmem:[%s3 + $0x4c] sm:$0xf]
    %v335 = vld [vmem:[%s3 + $0x50] sm:$0xf]
    %v336 = vld [vmem:[%s3 + $0x54] sm:$0xf]
    %v337 = vld [vmem:[%s3 + $0x58] sm:$0xf]
    %v338 = vld [vmem:[%s3 + $0x5c] sm:$0xf]
    %v339 = vld [vmem:[%s3 + $0x60] sm:$0xf]
    %v340 = vld [vmem:[%s3 + $0x64] sm:$0xf]
    %v341 = vld [vmem:[%s3 + $0x68] sm:$0xf]
    %v342 = vld [vmem:[%s3 + $0x6c] sm:$0xf]
    %v343 = vld [vmem:[%s3 + $0x70] sm:$0xf]
    %v344 = vld [vmem:[%s3 + $0x74] sm:$0xf]
    %v345 = vld [vmem:[%s3 + $0x78] sm:$0xf]
    %v346 = vld [vmem:[%s3 + $0x7c] sm:$0xf]
    %v347 = vld [vmem:[%s3 + $0x80] sm:$0xf]
    %v348 = vld [vmem:[%s3 + $0x84] sm:$0xf]
    %v349 = vld [vmem:[%s3 + $0x88] sm:$0xf]
    %v350 = vld [vmem:[%s3 + $0x8c] sm:$0xf]
    %v351 = vld [vmem:[%s3 + $0x90] sm:$0xf]
    %v352 = vld [vmem:[%s3 + $0x94] sm:$0xf]
    %v353 = vld [vmem:[%s3 + $0x98] sm:$0xf]
    %v354 = vld [vmem:[%s3 + $0x9c] sm:$0xf]
    %v355 = vld [vmem:[%s3 + $0xa0] sm:$0xf]
    %v356 = vld [vmem:[%s3 + $0xa4] sm:$0xf]
    %v357 = vld [vmem:[%s3 + $0xa8] sm:$0xf]
    %v358 = vld [vmem:[%s3 + $0xac] sm:$0xf]
    %v359 = vld [vmem:[%s3 + $0xb0] sm:$0xf]
    %v360 = vld [vmem:[%s3 + $0xb4] sm:$0xf]
    %v361 = vld [vmem:[%s3 + $0xb8] sm:$0xf]
    %v362 = vld [vmem:[%s3 + $0xbc] sm:$0xf]
    %v363 = vld [vmem:[%s3 + $0xc0] sm:$0xf]
    %v364 = vld [vmem:[%s3 + $0xc4] sm:$0xf]
    %v365 = vld [vmem:[%s3 + $0xc8] sm:$0xf]
    %v366 = vld [vmem:[%s3 + $0xcc] sm:$0xf]
    %v367 = vld [vmem:[%s3 + $0xd0] sm:$0xf]
    %v368 = vld [vmem:[%s3 + $0xd4] sm:$0xf]
    %v369 = vld [vmem:[%s3 + $0xd8] sm:$0xf]
    %v370 = vld [vmem:[%s3 + $0xdc] sm:$0xf]
    %v371 = vld [vmem:[%s3 + $0xe0] sm:$0xf]
    %v372 = vld [vmem:[%s3 + $0xe4] sm:$0xf]
    %v373 = vld [vmem:[%s3 + $0xe8] sm:$0xf]
    %v374 = vld [vmem:[%s3 + $0xec] sm:$0xf]
    %v375 = vld [vmem:[%s3 + $0xf0] sm:$0xf]
    %v376 = vld [vmem:[%s3 + $0xf4] sm:$0xf]
    %v377 = vld [vmem:[%s3 + $0xf8] sm:$0xf]
    %v378 = vld [vmem:[%s3 + $0xfc] sm:$0xf]
    %v379 = vld [vmem:[%s3 + $0x100] sm:$0xf]
    %v380 = vld [vmem:[%s3 + $0x104] sm:$0xf]
    %v381 = vld [vmem:[%s3 + $0x108] sm:$0xf]
    %v382 = vld [vmem:[%s3 + $0x10c] sm:$0xf]
    %v383 = vld [vmem:[%s3 + $0x110] sm:$0xf]
    %v384 = vld [vmem:[%s3 + $0x114] sm:$0xf]
    %v385 = vld [vmem:[%s3 + $0x118] sm:$0xf]
    %v386 = vld [vmem:[%s3 + $0x11c] sm:$0xf]
    %v387 = vld [vmem:[%s3 + $0x120] sm:$0xf]
    %v388 = vld [vmem:[%s3 + $0x124] sm:$0xf]
    %v389 = vld [vmem:[%s3 + $0x128] sm:$0xf]
    %v390 = vld [vmem:[%s3 + $0x12c] sm:$0xf]
    %v391 = vld [vmem:[%s3 + $0x130] sm:$0xf]
    %v392 = vld [vmem:[%s3 + $0x134] sm:$0xf]
    %v393 = vld [vmem:[%s3 + $0x138] sm:$0xf]
    %v394 = vld [vmem:[%s3 + $0x13c] sm:$0xf]
    %v395 = vld [vmem:[%s4] sm:$0x1]
    %v397 = vlaneseq
    %v398 = vshrl.u32 %v397, 7
    %v399 = vsub.s32 0, %v398
    %v400 = vrot.slane %v395, %v399
    %v482 = vunpack.c.l.b16 %v315
    %v483 = vunpack.c.l.b16 %v316
    %v484 = vunpack.c.l.b16 %v317
    %v485 = vunpack.c.l.b16 %v318
    %v486 = vunpack.c.l.b16 %v319
    %v487 = vunpack.c.l.b16 %v320
    %v488 = vunpack.c.l.b16 %v321
    %v489 = vunpack.c.l.b16 %v322
    %v490 = vunpack.c.l.b16 %v323
    %v491 = vunpack.c.l.b16 %v324
    %v492 = vunpack.c.l.b16 %v325
    %v493 = vunpack.c.l.b16 %v326
    %v494 = vunpack.c.l.b16 %v327
    %v495 = vunpack.c.l.b16 %v328
    %v496 = vunpack.c.l.b16 %v329
    %v497 = vunpack.c.l.b16 %v330
    %v498 = vunpack.c.l.b16 %v331
    %v499 = vunpack.c.l.b16 %v332
    %v500 = vunpack.c.l.b16 %v333
    %v501 = vunpack.c.l.b16 %v334
    %v502 = vunpack.c.l.b16 %v335
    %v503 = vunpack.c.l.b16 %v336
    %v504 = vunpack.c.l.b16 %v337
    %v505 = vunpack.c.l.b16 %v338
    %v506 = vunpack.c.l.b16 %v339
    %v507 = vunpack.c.l.b16 %v340
    %v508 = vunpack.c.l.b16 %v341
    %v509 = vunpack.c.l.b16 %v342
    %v510 = vunpack.c.l.b16 %v343
    %v511 = vunpack.c.l.b16 %v344
    %v512 = vunpack.c.l.b16 %v345
    %v513 = vunpack.c.l.b16 %v346
    %v514 = vunpack.c.l.b16 %v347
    %v515 = vunpack.c.l.b16 %v348
    %v516 = vunpack.c.l.b16 %v349
    %v517 = vunpack.c.l.b16 %v350
    %v518 = vunpack.c.l.b16 %v351
    %v519 = vunpack.c.l.b16 %v352
    %v520 = vunpack.c.l.b16 %v353
    %v521 = vunpack.c.l.b16 %v354
    %v522 = vunpack.c.l.b16 %v355
    %v523 = vunpack.c.l.b16 %v356
    %v524 = vunpack.c.l.b16 %v357
    %v525 = vunpack.c.l.b16 %v358
    %v526 = vunpack.c.l.b16 %v359
    %v527 = vunpack.c.l.b16 %v360
    %v528 = vunpack.c.l.b16 %v361
    %v529 = vunpack.c.l.b16 %v362
    %v530 = vunpack.c.l.b16 %v363
    %v531 = vunpack.c.l.b16 %v364
    %v532 = vunpack.c.l.b16 %v365
    %v533 = vunpack.c.l.b16 %v366
    %v534 = vunpack.c.l.b16 %v367
    %v535 = vunpack.c.l.b16 %v368
    %v536 = vunpack.c.l.b16 %v369
    %v537 = vunpack.c.l.b16 %v370
    %v538 = vunpack.c.l.b16 %v371
    %v539 = vunpack.c.l.b16 %v372
    %v540 = vunpack.c.l.b16 %v373
    %v541 = vunpack.c.l.b16 %v374
    %v542 = vunpack.c.l.b16 %v375
    %v543 = vunpack.c.l.b16 %v376
    %v544 = vunpack.c.l.b16 %v377
    %v545 = vunpack.c.l.b16 %v378
    %v546 = vunpack.c.l.b16 %v379
    %v547 = vunpack.c.l.b16 %v380
    %v548 = vunpack.c.l.b16 %v381
    %v549 = vunpack.c.l.b16 %v382
    %v550 = vunpack.c.l.b16 %v383
    %v551 = vunpack.c.l.b16 %v384
    %v552 = vunpack.c.l.b16 %v385
    %v553 = vunpack.c.l.b16 %v386
    %v554 = vunpack.c.l.b16 %v387
    %v555 = vunpack.c.l.b16 %v388
    %v556 = vunpack.c.l.b16 %v389
    %v557 = vunpack.c.l.b16 %v390
    %v558 = vunpack.c.l.b16 %v391
    %v559 = vunpack.c.l.b16 %v392
    %v560 = vunpack.c.l.b16 %v393
    %v561 = vunpack.c.l.b16 %v394
    %v562 = vpack.c.b16 %v483, %v482
    %v563 = vpack.c.b16 %v485, %v484
    %v564 = vpack.c.b16 %v487, %v486
    %v565 = vpack.c.b16 %v489, %v488
    %v566 = vpack.c.b16 %v491, %v490
    %v567 = vpack.c.b16 %v493, %v492
    %v568 = vpack.c.b16 %v495, %v494
    %v569 = vpack.c.b16 %v497, %v496
    %v570 = vpack.c.b16 %v499, %v498
    %v571 = vpack.c.b16 %v501, %v500
    %v572 = vpack.c.b16 %v503, %v502
    %v573 = vpack.c.b16 %v505, %v504
    %v574 = vpack.c.b16 %v507, %v506
    %v575 = vpack.c.b16 %v509, %v508
    %v576 = vpack.c.b16 %v511, %v510
    %v577 = vpack.c.b16 %v513, %v512
    %v578 = vpack.c.b16 %v515, %v514
    %v579 = vpack.c.b16 %v517, %v516
    %v580 = vpack.c.b16 %v519, %v518
    %v581 = vpack.c.b16 %v521, %v520
    %v582 = vpack.c.b16 %v523, %v522
    %v583 = vpack.c.b16 %v525, %v524
    %v584 = vpack.c.b16 %v527, %v526
    %v585 = vpack.c.b16 %v529, %v528
    %v586 = vpack.c.b16 %v531, %v530
    %v587 = vpack.c.b16 %v533, %v532
    %v588 = vpack.c.b16 %v535, %v534
    %v589 = vpack.c.b16 %v537, %v536
    %v590 = vpack.c.b16 %v539, %v538
    %v591 = vpack.c.b16 %v541, %v540
    %v592 = vpack.c.b16 %v543, %v542
    %v593 = vpack.c.b16 %v545, %v544
    %v594 = vpack.c.b16 %v547, %v546
    %v595 = vpack.c.b16 %v549, %v548
    %v596 = vpack.c.b16 %v551, %v550
    %v597 = vpack.c.b16 %v553, %v552
    %v598 = vpack.c.b16 %v555, %v554
    %v599 = vpack.c.b16 %v557, %v556
    %v600 = vpack.c.b16 %v559, %v558
    %v601 = vpack.c.b16 %v561, %v560
    %642 = vmatprep.subr.bf16.mxu0 0
    %643 = vmatpush1.bf16.msra.mxu0 %v562
    %644 = vmatprep.subr.bf16.mxu0 0
    %645 = vmatpush1.bf16.msra.mxu0 %v563
    %646 = vmatprep.subr.bf16.mxu0 0
    %647 = vmatpush1.bf16.msra.mxu0 %v564
    %648 = vmatprep.subr.bf16.mxu0 0
    %649 = vmatpush1.bf16.msra.mxu0 %v565
    %650 = vmatprep.subr.bf16.mxu0 0
    %651 = vmatpush1.bf16.msra.mxu0 %v566
    %652 = vmatprep.subr.bf16.mxu0 0
    %653 = vmatpush1.bf16.msra.mxu0 %v567
    %654 = vmatprep.subr.bf16.mxu0 0
    %655 = vmatpush1.bf16.msra.mxu0 %v568
    %656 = vmatprep.subr.bf16.mxu0 0
    %657 = vmatpush1.bf16.msra.mxu0 %v569
    %658 = vmatprep.subr.bf16.mxu0 0
    %659 = vmatpush1.bf16.msra.mxu0 %v570
    %660 = vmatprep.subr.bf16.mxu0 0
    %661 = vmatpush1.bf16.msra.mxu0 %v571
    %662 = vmatprep.subr.bf16.mxu0 0
    %663 = vmatpush1.bf16.msra.mxu0 %v572
    %664 = vmatprep.subr.bf16.mxu0 0
    %665 = vmatpush1.bf16.msra.mxu0 %v573
    %666 = vmatprep.subr.bf16.mxu0 0
    %667 = vmatpush1.bf16.msra.mxu0 %v574
    %668 = vmatprep.subr.bf16.mxu0 0
    %669 = vmatpush1.bf16.msra.mxu0 %v575
    %670 = vmatprep.subr.bf16.mxu0 0
    %671 = vmatpush1.bf16.msra.mxu0 %v576
    %672 = vmatprep.subr.bf16.mxu0 0
    %673 = vmatpush1.bf16.msra.mxu0 %v577
    %674 = vmatprep.mubr.bf16.mxu0 %v311
    %675 = vmatmul.mubr.bf16.gmra.mrb[0].mxu0 %v310
    %v676 = vpop.f32.mrb[0].mxu0
    %v677 = vadd.f32 %v400, %v676
    %v678 = vpop.f32.mrb[0].mxu0
    %v679 = vpop.f32.mrb[0].mxu0
    %v680 = vpop.f32.mrb[0].mxu0
    %681 = vdwg.mxu0
    %682 = vmatprep.subr.bf16.mxu0 0
    %683 = vmatpush1.bf16.msra.mxu0 %v578
    %684 = vmatprep.subr.bf16.mxu0 0
    %685 = vmatpush1.bf16.msra.mxu0 %v579
    %686 = vmatprep.subr.bf16.mxu0 0
    %687 = vmatpush1.bf16.msra.mxu0 %v580
    %688 = vmatprep.subr.bf16.mxu0 0
    %689 = vmatpush1.bf16.msra.mxu0 %v581
    %690 = vmatprep.subr.bf16.mxu0 0
    %691 = vmatpush1.bf16.msra.mxu0 %v582
    %692 = vmatprep.subr.bf16.mxu0 0
    %693 = vmatpush1.bf16.msra.mxu0 %v583
    %694 = vmatprep.subr.bf16.mxu0 0
    %695 = vmatpush1.bf16.msra.mxu0 %v584
    %696 = vmatprep.subr.bf16.mxu0 0
    %697 = vmatpush1.bf16.msra.mxu0 %v585
    %698 = vmatprep.subr.bf16.mxu0 0
    %699 = vmatpush1.bf16.msra.mxu0 %v586
    %700 = vmatprep.subr.bf16.mxu0 0
    %701 = vmatpush1.bf16.msra.mxu0 %v587
    %702 = vmatprep.subr.bf16.mxu0 0
    %703 = vmatpush1.bf16.msra.mxu0 %v588
    %704 = vmatprep.subr.bf16.mxu0 0
    %705 = vmatpush1.bf16.msra.mxu0 %v589
    %706 = vmatprep.subr.bf16.mxu0 0
    %707 = vmatpush1.bf16.msra.mxu0 %v590
    %708 = vmatprep.subr.bf16.mxu0 0
    %709 = vmatpush1.bf16.msra.mxu0 %v591
    %710 = vmatprep.subr.bf16.mxu0 0
    %711 = vmatpush1.bf16.msra.mxu0 %v592
    %712 = vmatprep.subr.bf16.mxu0 0
    %713 = vmatpush1.bf16.msra.mxu0 %v593
    %714 = vmatprep.mubr.bf16.mxu0 %v313
    %715 = vmatmul.mubr.bf16.gmra.mrb[0].mxu0 %v312
    %v716 = vpop.f32.mrb[0].mxu0
    %v717 = vadd.f32 %v677, %v716
    %v718 = vpop.f32.mrb[0].mxu0
    %v719 = vpop.f32.mrb[0].mxu0
    %v720 = vpop.f32.mrb[0].mxu0
    %721 = vdwg.mxu0
    %722 = vmatprep.subr.bf16.mxu0 0
    %723 = vmatpush1.bf16.msra.mxu0 %v594
    %724 = vmatprep.subr.bf16.mxu0 0
    %725 = vmatpush1.bf16.msra.mxu0 %v595
    %726 = vmatprep.subr.bf16.mxu0 0
    %727 = vmatpush1.bf16.msra.mxu0 %v596
    %728 = vmatprep.subr.bf16.mxu0 0
    %729 = vmatpush1.bf16.msra.mxu0 %v597
    %730 = vmatprep.subr.bf16.mxu0 0
    %731 = vmatpush1.bf16.msra.mxu0 %v598
    %732 = vmatprep.subr.bf16.mxu0 0
    %733 = vmatpush1.bf16.msra.mxu0 %v599
    %734 = vmatprep.subr.bf16.mxu0 0
    %735 = vmatpush1.bf16.msra.mxu0 %v600
    %736 = vmatprep.subr.bf16.mxu0 0
    %737 = vmatpush1.bf16.msra.mxu0 %v601
    %738 = vmatprep.subr.bf16.mxu0 0
    %739 = vmatpush1.bf16.msra.mxu0 0
    %740 = vmatprep.subr.bf16.mxu0 0
    %741 = vmatpush1.bf16.msra.mxu0 0
    %742 = vmatprep.subr.bf16.mxu0 0
    %743 = vmatpush1.bf16.msra.mxu0 0
    %744 = vmatprep.subr.bf16.mxu0 0
    %745 = vmatpush1.bf16.msra.mxu0 0
    %746 = vmatprep.subr.bf16.mxu0 0
    %747 = vmatpush1.bf16.msra.mxu0 0
    %748 = vmatprep.subr.bf16.mxu0 0
    %749 = vmatpush1.bf16.msra.mxu0 0
    %750 = vmatprep.subr.bf16.mxu0 0
    %751 = vmatpush1.bf16.msra.mxu0 0
    %752 = vmatprep.subr.bf16.mxu0 0
    %753 = vmatpush1.bf16.msra.mxu0 0
    %754 = vmatprep.mubr.bf16.mxu0 0
    %755 = vmatmul.mubr.bf16.gmra.mrb[0].mxu0 %v314
    %v756 = vpop.f32.mrb[0].mxu0
    %v757 = vadd.f32 %v717, %v756
    %v758 = vpop.f32.mrb[0].mxu0
    %v759 = vpop.f32.mrb[0].mxu0
    %v760 = vpop.f32.mrb[0].mxu0
    %761 = vdwg.mxu0
    %762 = vst.msk [vmem:[#allocation2] sm:$0xff] %vm179, %v757
    // Predicated region
    $region22: #{tpu_custom_call.1} parent=1 // pred_check
      _
    $region23: #{tpu_custom_call.1} parent=1 // pred_check_branch
      %764 = sbr.rel (0) target = $region25
    $region24: #{tpu_custom_call.1} parent=1 // pred_region
      %s766 = ssub.s32 128, 128
      %767 = vsyncadd [#allocation3], %s766
      %s769 = sshll.u32 [#allocation2], 4
      %s770 = int_to_ptr.vmem [resolvable:$true] %s769
      %772 = dma.vmem_to_hbm [thread:$0]  %s770, 128, %s5, [#allocation3]
    $region25: #{tpu_custom_call.1} parent=1 // pred_fallthru
      _
    // Predicated region
    $region26: #{tpu_custom_call.1} parent=1 // pred_check
      _
    $region27: #{tpu_custom_call.1} parent=1 // pred_check_branch
      %774 = sbr.rel (0) target = $region29
    $region28: #{tpu_custom_call.1} parent=1 // pred_region
      %775 = dma.done [#allocation3], 128
    $region29: #{tpu_custom_call.1} parent=1 // pred_fallthru
      _
    %776 = vsyncpa [#allocation3], 1

</llo_original>
